<compile_context>
chip_gen: v7x
topology: tpu7x:2x2x1
jax: 0.10.0
libtpu: 0.0.40
codegen_flags: <defaults>
</compile_context>

<pallas_src>
import jax
import jax.numpy as jnp
from jax.experimental import pallas as pl
from jax.experimental.pallas import tpu as pltpu


def _ada_ln_kernel(eps, inv_h, tb, whole_batch):
    """Kernel closure over static config.

    x block:      (tb, ts, H)
    scale1/shift: resident (B_pad, H) VMEM blocks (DMA'd once)
    """
    def kernel(x_ref, scale1_ref, shift_ref, o_ref):
        x = x_ref[...].astype(jnp.float32)                       # (tb, ts, H)

        # LayerNorm over H: biased variance, eps inside rsqrt (matches
        # nn.LayerNorm(elementwise_affine=False)).  Single 1/H constant,
        # centered x reused for the variance.
        mean = jnp.sum(x, axis=-1, keepdims=True) * inv_h
        xc = x - mean
        var = jnp.sum(xc * xc, axis=-1, keepdims=True) * inv_h
        xn = xc * jax.lax.rsqrt(var + eps)

        if whole_batch:
            sc = scale1_ref[...]                                  # (tb, H)
            sh = shift_ref[...]
        else:
            b0 = pl.program_id(0) * tb
            if tb % 8 == 0:
                b0 = pl.multiple_of(b0, 8)
            sc = scale1_ref[pl.ds(b0, tb), :]                     # (tb, H)
            sh = shift_ref[pl.ds(b0, tb), :]

        sc = sc.astype(jnp.float32)[:, None, :]                   # (tb, 1, H)
        sh = sh.astype(jnp.float32)[:, None, :]
        o_ref[...] = (sc * xn + sh).astype(o_ref.dtype)
    return kernel


def _choose_tiles(B, S, H, itemsize):
    """Pick (tb, ts): big enough to amortize per-step overhead, small enough
    that x+out double buffers *plus* the in-kernel f32 temporaries fit VMEM,
    and with >= 2 parallel grid steps for v7x megacore."""
    # Per tile-row (width H) bytes:
    #   x in + out, each double-buffered (2 * 2 * itemsize * H)
    #   + ~3 full-tile f32 temporaries (upcast / centered / normalized).
    per_row = (4 * itemsize + 12) * H
    budget = 6 * 1024 * 1024                       # conservative even for v7x (64 MiB VMEM)
    max_rows = max(8, ((budget // per_row) // 8) * 8)

    if S <= max_rows:
        ts = S                                     # full seq axis (always a legal block)
        tb = max(1, min(B, max_rows // max(S, 1))) # batch-tile small-S shapes
    else:
        ts = max_rows                              # multiple of 8
        tb = 1

    def n_steps(tb_, ts_):
        return -(-B // tb_) * (-(-S // ts_))

    # Megacore balance (v7x has 2 TensorCores; no-op on v5e/v6e).
    if n_steps(tb, ts) < 2:
        if B >= 2:
            tb = -(-B // 2)
        elif S >= 16:
            ts = max(8, ((S // 2) // 8) * 8)
    return tb, ts


def ada_layer_norm(x, context, w_scale, b_scale, w_shift, b_shift, eps=1e-5):
    """x: (B, S, H); context: (B, H); weights in PyTorch Linear layout (H_out, H_in)."""
    B, S, H = x.shape
    f32 = jnp.float32
    # TODO(synk): if H is not a multiple of 128, pad H in the wrapper (with an
    # in-kernel lane mask for the moments) to keep stores lane-dense; with a
    # multiple-of-128 H the layout below is already optimal.

    # ---- hoisted prologue: SiLU + one fused (B,H)@(H,2H) GEMM for scale & shift ----
    c = context.astype(f32)
    c = c * jax.nn.sigmoid(c)                                              # SiLU
    w_cat = jnp.concatenate([w_scale.astype(f32).T, w_shift.astype(f32).T], axis=1)  # (H, 2H)
    b_cat = jnp.concatenate([1.0 + b_scale.astype(f32), b_shift.astype(f32)])        # (2H,)  (+1 folded)
    ss = jnp.dot(c, w_cat, preferred_element_type=f32) + b_cat             # (B, 2H)
    scale1, shift = ss[:, :H], ss[:, H:]

    tb, ts = _choose_tiles(B, S, H, jnp.dtype(x.dtype).itemsize)
    nb, ns = pl.cdiv(B, tb), pl.cdiv(S, ts)

    # Pad the (tiny) per-batch scale/shift so in-kernel row slices never read OOB.
    B_pad = nb * tb
    if B_pad != B:
        scale1 = jnp.pad(scale1, ((0, B_pad - B), (0, 0)))
        shift = jnp.pad(shift, ((0, B_pad - B), (0, 0)))

    kernel = _ada_ln_kernel(float(eps), 1.0 / H, tb, whole_batch=(tb == B_pad))

    return pl.pallas_call(
        kernel,
        out_shape=jax.ShapeDtypeStruct((B, S, H), x.dtype),
        grid_spec=pltpu.PrefetchScalarGridSpec(
            num_scalar_prefetch=0,
            grid=(nb, ns),
            in_specs=[
                pl.BlockSpec((tb, ts, H), lambda b, s: (b, s, 0)),   # x tiles
                pl.BlockSpec((B_pad, H), lambda b, s: (0, 0)),       # scale1: resident, one DMA
                pl.BlockSpec((B_pad, H), lambda b, s: (0, 0)),       # shift:  resident, one DMA
            ],
            out_specs=pl.BlockSpec((tb, ts, H), lambda b, s: (b, s, 0)),
        ),
        compiler_params=pltpu.CompilerParams(
            dimension_semantics=("parallel", "parallel"),
            vmem_limit_bytes=32 * 1024 * 1024,
        ),
    )(x, scale1, shift)


def ada_layer_norm_ref(x, context, w_scale, b_scale, w_shift, b_shift, eps=1e-5):
    c = context * jax.nn.sigmoid(context)
    scale = c @ w_scale.T + b_scale
    shift = c @ w_shift.T + b_shift
    mean = jnp.mean(x, axis=-1, keepdims=True)
    var = jnp.mean(jnp.square(x - mean), axis=-1, keepdims=True)
    xn = (x - mean) / jnp.sqrt(var + eps)
    return (1.0 + scale[:, None, :]) * xn + shift[:, None, :]


if __name__ == "__main__":
    B, S, H = 2, 8, 128
    key = jax.random.PRNGKey(0)
    kx, kc, kw1, kb1, kw2, kb2 = jax.random.split(key, 6)

    x = jax.random.normal(kx, (B, S, H), dtype=jnp.float32)
    context = jax.random.normal(kc, (B, H), dtype=jnp.float32)

    # Deterministic synthetic parameters (PyTorch Linear layout: (out, in)).
    # NOTE: the module's reset_parameters() zeros everything; we use nonzero
    # deterministic values so the kernel actually exercises the affine paths.
    w_scale = jax.random.normal(kw1, (H, H), dtype=jnp.float32) * 0.02
    b_scale = jax.random.normal(kb1, (H,), dtype=jnp.float32) * 0.02
    w_shift = jax.random.normal(kw2, (H, H), dtype=jnp.float32) * 0.02
    b_shift = jax.random.normal(kb2, (H,), dtype=jnp.float32) * 0.02

    out = ada_layer_norm(x, context, w_scale, b_scale, w_shift, b_shift)
    out = jax.block_until_ready(out)

    ref = ada_layer_norm_ref(x, context, w_scale, b_scale, w_shift, b_shift)
    assert out.shape == (B, S, H)
    assert jnp.allclose(out, ref, atol=1e-5, rtol=1e-5), "mismatch vs reference"

    print("KERNEL_OK")
</pallas_src>

<mosaic_0001>
module attributes {stable_mosaic.version = 11 : i64} {
  func.func @kernel(%arg0: i32, %arg1: i32, %arg2: memref<1x8x128xf32, #tpu.memory_space<vmem>>, %arg3: memref<2x128xf32, #tpu.memory_space<vmem>>, %arg4: memref<2x128xf32, #tpu.memory_space<vmem>>, %arg5: memref<1x8x128xf32, #tpu.memory_space<vmem>>) attributes {dimension_semantics = [#tpu.dimension_semantics<parallel>, #tpu.dimension_semantics<parallel>], iteration_bounds = array<i64: 2, 1>, scalar_prefetch = 0 : i64, scratch_operands = 0 : i64, tpu.core_type = #tpu.core_type<tc>, window_params = [{transform_indices = @transform_0, window_bounds = array<i64: 1, 8, 128>}, {pipeline_mode = #tpu.pipeline_mode<synchronous>, transform_indices = @transform_1, window_bounds = array<i64: 2, 128>}, {pipeline_mode = #tpu.pipeline_mode<synchronous>, transform_indices = @transform_2, window_bounds = array<i64: 2, 128>}, {transform_indices = @transform_3, window_bounds = array<i64: 1, 8, 128>}]} {
    %c0 = arith.constant 0 : index
    %c0_0 = arith.constant 0 : index
    %c0_1 = arith.constant 0 : index
    %0 = vector.load %arg2[%c0, %c0_0, %c0_1] : memref<1x8x128xf32, #tpu.memory_space<vmem>>, vector<1x8x128xf32>
    %cst = arith.constant dense<0.000000e+00> : vector<1x8xf32>
    %1 = vector.multi_reduction <add>, %0, %cst [2] : vector<1x8x128xf32> to vector<1x8xf32>
    %2 = vector.shape_cast %1 : vector<1x8xf32> to vector<1x8x1xf32>
    %cst_2 = arith.constant 7.812500e-03 : f32
    %3 = vector.broadcast %cst_2 : f32 to vector<1x8x1xf32>
    %4 = arith.mulf %2, %3 : vector<1x8x1xf32>
    %5 = vector.broadcast %4 : vector<1x8x1xf32> to vector<1x8x128xf32>
    %6 = arith.subf %0, %5 : vector<1x8x128xf32>
    %7 = arith.mulf %6, %6 : vector<1x8x128xf32>
    %cst_3 = arith.constant dense<0.000000e+00> : vector<1x8xf32>
    %8 = vector.multi_reduction <add>, %7, %cst_3 [2] : vector<1x8x128xf32> to vector<1x8xf32>
    %9 = vector.shape_cast %8 : vector<1x8xf32> to vector<1x8x1xf32>
    %cst_4 = arith.constant 7.812500e-03 : f32
    %10 = vector.broadcast %cst_4 : f32 to vector<1x8x1xf32>
    %11 = arith.mulf %9, %10 : vector<1x8x1xf32>
    %cst_5 = arith.constant 9.99999974E-6 : f32
    %12 = vector.broadcast %cst_5 : f32 to vector<1x8x1xf32>
    %13 = arith.addf %11, %12 : vector<1x8x1xf32>
    %14 = math.rsqrt %13 : vector<1x8x1xf32>
    %15 = vector.broadcast %14 : vector<1x8x1xf32> to vector<1x8x128xf32>
    %16 = arith.mulf %6, %15 : vector<1x8x128xf32>
    %c1_i32 = arith.constant 1 : i32
    %17 = arith.muli %arg0, %c1_i32 : i32
    %18 = arith.index_cast %17 : i32 to index
    %c0_6 = arith.constant 0 : index
    %19 = vector.load %arg3[%18, %c0_6] : memref<2x128xf32, #tpu.memory_space<vmem>>, vector<1x128xf32>
    %20 = arith.index_cast %17 : i32 to index
    %c0_7 = arith.constant 0 : index
    %21 = vector.load %arg4[%20, %c0_7] : memref<2x128xf32, #tpu.memory_space<vmem>>, vector<1x128xf32>
    %22 = vector.shape_cast %19 : vector<1x128xf32> to vector<1x1x128xf32>
    %23 = vector.shape_cast %21 : vector<1x128xf32> to vector<1x1x128xf32>
    %24 = vector.broadcast %22 : vector<1x1x128xf32> to vector<1x8x128xf32>
    %25 = arith.mulf %24, %16 : vector<1x8x128xf32>
    %26 = vector.broadcast %23 : vector<1x1x128xf32> to vector<1x8x128xf32>
    %27 = arith.addf %25, %26 : vector<1x8x128xf32>
    %c0_8 = arith.constant 0 : index
    %c0_9 = arith.constant 0 : index
    %c0_10 = arith.constant 0 : index
    %28 = vector.load %arg5[%c0_8, %c0_9, %c0_10] : memref<1x8x128xf32, #tpu.memory_space<vmem>>, vector<1x8x128xf32>
    tpu.vector_store %arg5[%c0_8, %c0_9, %c0_10], %27 {strides = array<i32>} : memref<1x8x128xf32, #tpu.memory_space<vmem>>, vector<1x8x128xf32>,
    return
  }
  func.func @transform_0(%arg0: i32, %arg1: i32) -> (i32, i32, i32) {
    %c0_i32 = arith.constant 0 : i32
    %c0_i32_0 = arith.constant 0 : i32
    return %arg0, %arg1, %c0_i32 : i32, i32, i32
  }
  func.func @transform_1(%arg0: i32, %arg1: i32) -> (i32, i32) {
    %c0_i32 = arith.constant 0 : i32
    %c0_i32_0 = arith.constant 0 : i32
    %c0_i32_1 = arith.constant 0 : i32
    return %c0_i32, %c0_i32_0 : i32, i32
  }
  func.func @transform_2(%arg0: i32, %arg1: i32) -> (i32, i32) {
    %c0_i32 = arith.constant 0 : i32
    %c0_i32_0 = arith.constant 0 : i32
    %c0_i32_1 = arith.constant 0 : i32
    return %c0_i32, %c0_i32_0 : i32, i32
  }
  func.func @transform_3(%arg0: i32, %arg1: i32) -> (i32, i32, i32) {
    %c0_i32 = arith.constant 0 : i32
    %c0_i32_0 = arith.constant 0 : i32
    return %arg0, %arg1, %c0_i32 : i32, i32, i32
  }
}

</mosaic_0001>

<llo_original>
// kernel: tpu_custom_call.1
$region0: #{tpu_custom_call.1}
  #allocation0 [shape = 'u32[]', space=smem, size = 0x4, offset = 0x4, fixed_abs, tag = 'smem constant byte address 0x4 - core index']
  #allocation1 [shape = 'u32[144,128]{1,0:T(1,128)}', space=vmem, size = 0x12000, scoped, tag = 'internal scratch']
  %s0 = inlined_call_operand.hbm [shape: f32[2,8,128], index: 0, kind: input, shape index: {}]
  %s1 = inlined_call_operand.vmem [shape: f32[2,128], index: 1, kind: input, shape index: {}]
  %s2 = inlined_call_operand.vmem [shape: f32[2,128], index: 2, kind: input, shape index: {}]
  %s3 = inlined_call_operand.hbm [shape: f32[2,8,128], index: 3, kind: output, shape index: {}]
  %s4 = sld [smem:[#allocation0]]
  $region49: #{tpu_custom_call.1} parent=0
    _
  %s6 = ssub.s32 1, %s4
  %s7 = scalar_select 0, %s6, %s4
  $region1: #{tpu_custom_call.1} parent=0
    #allocation2 [shape = 'u8[8192]{0}', space=vmem, size = 0x2000, scoped, tag = 'input window, operand 0']
    #allocation3 [shape = 's32[2]{0}', space=sflag, size = 0x8, scoped, tag = 'scoped memory for tpu_custom_call.1']
    #allocation4 [shape = 's32[2]{0}', space=sflag, size = 0x8, scoped, tag = 'scoped memory for tpu_custom_call.1']
    #allocation5 [shape = 'u8[8192]{0}', space=vmem, size = 0x2000, scoped, tag = 'output window, operand 0']
    %8 = vsyncpa [#allocation3], 0
    %s9 = scalar_lea.sflag [#allocation3], 1
    %10 = vsyncpa %s9, 0
    %11 = vsyncpa [#allocation4], 0
    %s12 = scalar_lea.sflag [#allocation4], 1
    %13 = vsyncpa %s12, 0
    loop: start=0, step=1, limit=4
    $region2: #{tpu_custom_call.1} parent=1 // loop_pre_header
      _
    $region3: #{tpu_custom_call.1} parent=1 // loop_header
      %s15 = sphi 0, %s19
      %p16 = scmp.ge.s32.totalorder %s15, 4
      %s22 = sphi 0, %s34
      %s23 = sphi 0, %s30
      %s24 = sphi 0, %s22
      %s25 = sphi 0, %s23
      %s26 = sphi 0, %s24
      %s27 = sphi 0, %s25
      %s39 = sphi 0, %s41
      %s42 = sphi 0, %s39
      %s43 = sphi 0, %s42
      %s59 = sphi 0, %s43
      %s63 = sphi 0, %s63
      %s65 = sphi 0, %s63
      %s66 = sphi 0, %s65
      %s80 = sphi 0, %s66
      %s84 = sphi 0, %s84
      %s86 = sphi 0, %s84
      %s87 = sphi 0, %s86
      %s101 = sphi 0, %s87
      %s109 = sphi 0, %s111
      %s112 = sphi 0, %s109
      %s113 = sphi 0, %s112
      %s129 = sphi 0, %s113
    $region4: #{tpu_custom_call.1} parent=1 // loop_header_branch
      %18 = sbr.rel (%p16) target = $region8
    $region5: #{tpu_custom_call.1} parent=1 // loop_body
      %s20 = ssub.s32 %s15, 1
      %s21 = ssub.s32 %s15, 2
      %s28 = sadd.s32 1, %s23
      %p29 = scmp.ge.s32.totalorder %s28, 1
      %s30 = scalar_select %p29, 0, %s28
      %s31 = sadd.s32 1, %s22
      %s32 = scalar_select %p29, %s31, %s22
      %p33 = scmp.ge.s32.totalorder %s32, 2
      %s34 = scalar_select %p33, 0, %s32
      %s35 = ssub.s32 %s22, %s34
      %s36 = ssub.s32 %s23, %s30
      %s37 = sor.u32 %s35, %s36
      %p38 = scmp.eq.s32.totalorder %s37, 0
      %s40 = sadd.s32 %s39, 1
      %s41 = scalar_select %p38, %s39, %s40
      %p44 = pneg %p38
      %p45 = scmp.eq.s32.totalorder %s15, 1
      %p46 = por %p44, %p45
      %p47 = scmp.ne.s32.totalorder %s39, %s42
      %p48 = scmp.eq.s32.totalorder %s15, 0
      %p49 = por %p47, %p48
      %p50 = scmp.ne.s32.totalorder %s39, %s42
      %p51 = scmp.eq.s32.totalorder %s20, 1
      %p52 = por %p50, %p51
      %p53 = scmp.ne.s32.totalorder %s42, %s43
      %p54 = scmp.eq.s32.totalorder %s20, 0
      %p55 = por %p53, %p54
      %p56 = scmp.ne.s32.totalorder %s42, %s43
      %p57 = scmp.eq.s32.totalorder %s21, 1
      %p58 = por %p56, %p57
      %p60 = scmp.ne.s32.totalorder %s43, %s59
      %p61 = scmp.eq.s32.totalorder %s21, 0
      %p62 = por %p60, %p61
      %s64 = sadd.s32 %s63, 1
      %p67 = scmp.eq.s32.totalorder %s15, 1
      %p68 = scmp.ne.s32.totalorder %s63, %s65
      %p69 = scmp.eq.s32.totalorder %s15, 0
      %p70 = por %p68, %p69
      %p71 = scmp.ne.s32.totalorder %s63, %s65
      %p72 = scmp.eq.s32.totalorder %s20, 1
      %p73 = por %p71, %p72
      %p74 = scmp.ne.s32.totalorder %s65, %s66
      %p75 = scmp.eq.s32.totalorder %s20, 0
      %p76 = por %p74, %p75
      %p77 = scmp.ne.s32.totalorder %s65, %s66
      %p78 = scmp.eq.s32.totalorder %s21, 1
      %p79 = por %p77, %p78
      %p81 = scmp.ne.s32.totalorder %s66, %s80
      %p82 = scmp.eq.s32.totalorder %s21, 0
      %p83 = por %p81, %p82
      %s85 = sadd.s32 %s84, 1
      %p88 = scmp.eq.s32.totalorder %s15, 1
      %p89 = scmp.ne.s32.totalorder %s84, %s86
      %p90 = scmp.eq.s32.totalorder %s15, 0
      %p91 = por %p89, %p90
      %p92 = scmp.ne.s32.totalorder %s84, %s86
      %p93 = scmp.eq.s32.totalorder %s20, 1
      %p94 = por %p92, %p93
      %p95 = scmp.ne.s32.totalorder %s86, %s87
      %p96 = scmp.eq.s32.totalorder %s20, 0
      %p97 = por %p95, %p96
      %p98 = scmp.ne.s32.totalorder %s86, %s87
      %p99 = scmp.eq.s32.totalorder %s21, 1
      %p100 = por %p98, %p99
      %p102 = scmp.ne.s32.totalorder %s87, %s101
      %p103 = scmp.eq.s32.totalorder %s21, 0
      %p104 = por %p102, %p103
      %s105 = ssub.s32 %s22, %s34
      %s106 = ssub.s32 %s23, %s30
      %s107 = sor.u32 %s105, %s106
      %p108 = scmp.eq.s32.totalorder %s107, 0
      %s110 = sadd.s32 %s109, 1
      %s111 = scalar_select %p108, %s109, %s110
      %p114 = pneg %p108
      %p115 = scmp.eq.s32.totalorder %s15, 1
      %p116 = por %p114, %p115
      %p117 = scmp.ne.s32.totalorder %s109, %s112
      %p118 = scmp.eq.s32.totalorder %s15, 0
      %p119 = por %p117, %p118
      %p120 = scmp.ne.s32.totalorder %s109, %s112
      %p121 = scmp.eq.s32.totalorder %s20, 1
      %p122 = por %p120, %p121
      %p123 = scmp.ne.s32.totalorder %s112, %s113
      %p124 = scmp.eq.s32.totalorder %s20, 0
      %p125 = por %p123, %p124
      %p126 = scmp.ne.s32.totalorder %s112, %s113
      %p127 = scmp.eq.s32.totalorder %s21, 1
      %p128 = por %p126, %p127
      %p130 = scmp.ne.s32.totalorder %s113, %s129
      %p131 = scmp.eq.s32.totalorder %s21, 0
      %p132 = por %p130, %p131
      %p133 = scmp.le.s32.totalorder 1, %s15
      %p134 = scmp.lt.s32.totalorder %s15, 3
      %p135 = pnand %p133, %p134
      %p136 = pneg %p135
      // Predicated region
      $region9: #{tpu_custom_call.1} parent=5 // pred_check
        _
      $region10: #{tpu_custom_call.1} parent=5 // pred_check_branch
        %138 = sbr.rel (%p135) target = $region12
      $region11: #{tpu_custom_call.1} parent=5 // pred_region
        %s139 = ssub.s32 %s15, 1
        // Predicated region
        $region13: #{tpu_custom_call.1} parent=11 // pred_check
          %p140 = pneg %p76
        $region14: #{tpu_custom_call.1} parent=11 // pred_check_branch
          %142 = sbr.rel (%p140) target = $region16
        $region15: #{tpu_custom_call.1} parent=11 // pred_region
          _
        $region16: #{tpu_custom_call.1} parent=11 // pred_fallthru
          _
        // Predicated region
        $region17: #{tpu_custom_call.1} parent=11 // pred_check
          %p143 = pneg %p97
        $region18: #{tpu_custom_call.1} parent=11 // pred_check_branch
          %145 = sbr.rel (%p143) target = $region20
        $region19: #{tpu_custom_call.1} parent=11 // pred_region
          _
        $region20: #{tpu_custom_call.1} parent=11 // pred_fallthru
          _
      $region12: #{tpu_custom_call.1} parent=5 // pred_fallthru
        _
      %p146 = scmp.lt.s32.totalorder %s15, 2
      // Predicated region
      $region21: #{tpu_custom_call.1} parent=5 // pred_check
        %p147 = pneg %p146
      $region22: #{tpu_custom_call.1} parent=5 // pred_check_branch
        %149 = sbr.rel (%p147) target = $region24
      $region23: #{tpu_custom_call.1} parent=5 // pred_region
        // Predicated region
        $region25: #{tpu_custom_call.1} parent=23 // pred_check
          %p150 = pneg %p49
        $region26: #{tpu_custom_call.1} parent=23 // pred_check_branch
          %152 = sbr.rel (%p150) target = $region28
        $region27: #{tpu_custom_call.1} parent=23 // pred_region
          %s153 = sand.u32 %s39, 1
          %s154 = scalar_lea.sflag [#allocation3], %s153
          %s155 = sand.u32 %s39, 1
          %s156 = smul.addr %s155, 8
          %s157 = scalar_lea.vmem [#allocation2], %s156
          %s159 = ssub.s32 128, 128
          %160 = vsyncadd %s154, %s159
          %s161 = sadd.s32 %s23, %s22
          %s162 = smul.addr %s161, 128
          %s163 = scalar_lea.hbm %s0, %s162
          %s165 = sshll.u32 %s157, 4
          %s166 = int_to_ptr.vmem [resolvable:$true] %s165
          %168 = dma.hbm_to_vmem [thread:$0]  %s163, 128, %s166, %s154
        $region28: #{tpu_custom_call.1} parent=23 // pred_fallthru
          _
      $region24: #{tpu_custom_call.1} parent=5 // pred_fallthru
        _
      %p169 = scmp.le.s32.totalorder 1, %s15
      %p170 = scmp.lt.s32.totalorder %s15, 3
      %p171 = pnand %p169, %p170
      %p172 = pneg %p171
      // Predicated region
      $region29: #{tpu_custom_call.1} parent=5 // pred_check
        _
      $region30: #{tpu_custom_call.1} parent=5 // pred_check_branch
        %174 = sbr.rel (%p171) target = $region32
      $region31: #{tpu_custom_call.1} parent=5 // pred_region
        %s175 = ssub.s32 %s15, 1
        %s176 = sand.u32 %s42, 1
        %s177 = scalar_lea.sflag [#allocation3], %s176
        %s178 = sand.u32 %s42, 1
        %s179 = smul.addr %s178, 8
        %s180 = scalar_lea.vmem [#allocation2], %s179
        // Predicated region
        $region33: #{tpu_custom_call.1} parent=31 // pred_check
          %p181 = pneg %p55
        $region34: #{tpu_custom_call.1} parent=31 // pred_check_branch
          %183 = sbr.rel (%p181) target = $region36
        $region35: #{tpu_custom_call.1} parent=31 // pred_region
          %184 = dma.done %s177, 128
        $region36: #{tpu_custom_call.1} parent=31 // pred_fallthru
          _
        %s185 = sand.u32 %s42, 1
        %s186 = scalar_lea.sflag [#allocation3], %s185
        %s187 = sand.u32 %s42, 1
        %s188 = smul.addr %s187, 8
        %s189 = scalar_lea.vmem [#allocation2], %s188
        %p190 = pneg %p55
        %p191 = pneg %p52
        %p192 = pneg %p76
        %p193 = pneg %p73
        %p194 = pneg %p97
        %p195 = pneg %p94
        %p196 = pneg %p125
        %p197 = pneg %p122
        %s198 = sand.u32 %s112, 1
        %s199 = scalar_lea.sflag [#allocation4], %s198
        %s200 = sand.u32 %s112, 1
        %s201 = smul.addr %s200, 8
        %s202 = scalar_lea.vmem [#allocation5], %s201
        %v203 = vld [vmem:[%s180] sm:$0xff]
        %204 = vadd.xlane.f32.xlu0 %v203
        %v205 = vpop.xlane.xlu0 %204
        %v206 = vmul.f32 %v205, 0.0078125
        %v207 = vsub.f32 %v203, %v206
        %v208 = vmul.f32 %v207, %v207
        %209 = vadd.xlane.f32.xlu0 %v208
        %v210 = vpop.xlane.xlu0 %209
        %v211 = vmul.f32 %v210, 0.0078125
        %v212 = vadd.f32 %v211, 1e-05
        %v213 = vrsqrt.pop %v212
        %v214 = vmul.f32 %v207, %v213
        %s215 = scalar_lea.vmem %s1, %s24
        %v216 = vld [vmem:[%s215] sm:$0x1]
        %s217 = scalar_lea.vmem %s2, %s24
        %v218 = vld [vmem:[%s217] sm:$0x1]
        %v219 = vlaneseq
        %v220 = vshrl.u32 %v219, 7
        %v221 = vsub.s32 0, %v220
        %v222 = vrot.slane %v216, %v221
        %v223 = vmul.f32 %v222, %v214
        %v224 = vlaneseq
        %v225 = vshrl.u32 %v224, 7
        %v226 = vsub.s32 0, %v225
        %v227 = vrot.slane %v218, %v226
        %v228 = vadd.f32 %v223, %v227
        %229 = vst [vmem:[%s202] sm:$0xff] %v228
        %s230 = sand.u32 %s112, 1
        %s231 = scalar_lea.sflag [#allocation4], %s230
        %s232 = sand.u32 %s112, 1
        %s233 = smul.addr %s232, 8
        %s234 = scalar_lea.vmem [#allocation5], %s233
        // Predicated region
        $region37: #{tpu_custom_call.1} parent=31 // pred_check
          %p235 = pneg %p122
        $region38: #{tpu_custom_call.1} parent=31 // pred_check_branch
          %237 = sbr.rel (%p235) target = $region40
        $region39: #{tpu_custom_call.1} parent=31 // pred_region
          %s239 = ssub.s32 128, 128
          %240 = vsyncadd %s231, %s239
          %s241 = sadd.s32 %s25, %s24
          %s242 = smul.addr %s241, 128
          %s243 = scalar_lea.hbm %s3, %s242
          %s245 = sshll.u32 %s234, 4
          %s246 = int_to_ptr.vmem [resolvable:$true] %s245
          %248 = dma.vmem_to_hbm [thread:$0]  %s246, 128, %s243, %s231
        $region40: #{tpu_custom_call.1} parent=31 // pred_fallthru
          _
      $region32: #{tpu_custom_call.1} parent=5 // pred_fallthru
        _
      %p249 = scmp.le.s32.totalorder 2, %s15
      // Predicated region
      $region41: #{tpu_custom_call.1} parent=5 // pred_check
        %p250 = pneg %p249
      $region42: #{tpu_custom_call.1} parent=5 // pred_check_branch
        %252 = sbr.rel (%p250) target = $region44
      $region43: #{tpu_custom_call.1} parent=5 // pred_region
        %s253 = ssub.s32 %s15, 2
        // Predicated region
        $region45: #{tpu_custom_call.1} parent=43 // pred_check
          %p254 = pneg %p128
        $region46: #{tpu_custom_call.1} parent=43 // pred_check_branch
          %256 = sbr.rel (%p254) target = $region48
        $region47: #{tpu_custom_call.1} parent=43 // pred_region
          %s257 = sand.u32 %s113, 1
          %s258 = scalar_lea.sflag [#allocation4], %s257
          %s259 = sand.u32 %s113, 1
          %s260 = smul.addr %s259, 8
          %s261 = scalar_lea.vmem [#allocation5], %s260
          %262 = dma.done %s258, 128
        $region48: #{tpu_custom_call.1} parent=43 // pred_fallthru
          _
      $region44: #{tpu_custom_call.1} parent=5 // pred_fallthru
        _
    $region6: #{tpu_custom_call.1} parent=1 // loop_footer
      %s19 = sadd.s32 1, %s15
    $region7: #{tpu_custom_call.1} parent=1 // loop_footer_branch
      %14 = sbr.rel target = $region3
    $region8: #{tpu_custom_call.1} parent=1 // loop_exit
      _
    %263 = vsyncpa [#allocation3], 1
    %s264 = scalar_lea.sflag [#allocation3], 1
    %265 = vsyncpa %s264, 1
    %266 = vsyncpa [#allocation4], 1
    %s267 = scalar_lea.sflag [#allocation4], 1
    %268 = vsyncpa %s267, 1

</llo_original>
